<compile_context>
chip_gen: v5e
topology: v5e:2x2
jax: 0.10.0
libtpu: 0.0.40
codegen_flags: <defaults>
</compile_context>

<pallas_src>
import functools

import jax
import jax.numpy as jnp
from jax.experimental import pallas as pl
from jax.experimental.pallas import tpu as pltpu


def _round_up(x, m):
    return ((x + m - 1) // m) * m


def gnm_kernel(x_ref, adj_h_ref, bias_h_ref, adj_l_ref, bias_l_ref, o_ref,
               *, n_hidden):
    """Whole GNM forward in one invocation (no grid).

    x_ref      : (BP, NP)            padded input activations, f32
    adj_h_ref  : (max(L-1,1), NP, NP) hidden-layer weights
    bias_h_ref : (max(L-1,1), NP)     hidden-layer biases
    adj_l_ref  : (NP, KP)             last-layer weights, output cols pre-gathered
    bias_l_ref : (1, KP)              last-layer bias, output cols pre-gathered
    o_ref      : (BP, KP)             lane-dense output
    """
    h = x_ref[...]  # (BP, NP) f32, lives in vregs for the whole chain

    # Hidden layers: h = relu(h @ A_i + b_i)  (statically unrolled).
    for i in range(n_hidden):
        a = adj_h_ref[i]                       # (NP, NP)
        b = bias_h_ref[pl.ds(i, 1), :]         # (1, NP)
        h = jnp.maximum(
            jnp.dot(h, a, preferred_element_type=jnp.float32) + b, 0.0)

    # Last layer (no relu); output columns were folded into adj_l / bias_l.
    y = jnp.dot(h, adj_l_ref[...], preferred_element_type=jnp.float32)
    o_ref[...] = y + bias_l_ref[...]


@functools.partial(jax.jit, static_argnames=("idx_output",))
def gnm_forward(x, embeddings, adj, bias, idx_output):
    """x: (B, len(idx_input)) -> squeeze(x_final[:, idx_output])."""
    B = x.shape[0]
    L, N, _ = adj.shape
    n_out = len(idx_output)

    NP = _round_up(max(N, 128), 128)    # lane-pad node dim
    KP = _round_up(max(n_out, 128), 128)  # lane-pad output dim
    BP = _round_up(max(B, 8), 8)        # sublane-pad batch

    # Glue: repeat trainable embeddings over the batch, concatenate, pad.
    t = jnp.broadcast_to(embeddings, (B, embeddings.shape[1]))
    h0 = jnp.concatenate([x, t], axis=1).astype(jnp.float32)   # (B, N)
    h0 = jnp.pad(h0, ((0, BP - B), (0, NP - N)))

    # Hidden-layer weights, zero-padded to lane-dense tiles.
    n_hidden = L - 1
    if n_hidden > 0:
        adj_h = jnp.pad(adj[:L - 1].astype(jnp.float32),
                        ((0, 0), (0, NP - N), (0, NP - N)))
        bias_h = jnp.pad(bias[:L - 1].astype(jnp.float32),
                         ((0, 0), (0, NP - N)))
    else:  # dummies; never read (static unroll count is 0)
        adj_h = jnp.zeros((1, NP, NP), jnp.float32)
        bias_h = jnp.zeros((1, NP), jnp.float32)

    # Last layer: fold the output-column gather into the weights/bias so the
    # kernel writes only the needed columns (no relu follows the last layer,
    # so this is exact).
    idx = jnp.array(idx_output, dtype=jnp.int32)
    adj_l = jnp.pad(adj[L - 1][:, idx].astype(jnp.float32),
                    ((0, NP - N), (0, KP - n_out)))
    bias_l = jnp.pad(bias[L - 1][idx].astype(jnp.float32)[None, :],
                     ((0, 0), (0, KP - n_out)))

    out_pad = pl.pallas_call(
        functools.partial(gnm_kernel, n_hidden=n_hidden),
        out_shape=jax.ShapeDtypeStruct((BP, KP), jnp.float32),
        in_specs=[pl.BlockSpec(memory_space=pltpu.MemorySpace.VMEM)] * 5,
        out_specs=pl.BlockSpec(memory_space=pltpu.MemorySpace.VMEM),
    )(h0, adj_h, bias_h, adj_l, bias_l)

    out = out_pad[:B, :n_out]          # strip padding (static slice)
    return jnp.squeeze(out)            # matches torch .squeeze()


def gnm_reference(x, embeddings, adj, bias, idx_output):
    """Pure-JAX reference reproducing the PyTorch forward (eval mode)."""
    B = x.shape[0]
    t = jnp.broadcast_to(embeddings, (B, embeddings.shape[1]))
    h = jnp.concatenate([x, t], axis=1).astype(jnp.float32)
    L = adj.shape[0]
    for i in range(L - 1):
        h = jnp.maximum(h @ adj[i] + bias[i], 0.0)
    h = h @ adj[-1] + bias[-1]
    return jnp.squeeze(h[:, jnp.array(idx_output)])


if __name__ == "__main__":
    # Small shapes implied by the module.
    n_nodes = 32
    n_layers = 3
    idx_input = tuple(range(16))       # first 16 nodes receive input features
    idx_output = (24,)                 # single output node -> squeeze to (B,)
    batch = 8

    key = jax.random.PRNGKey(0)
    k_x, k_emb, k_adj, k_bias = jax.random.split(key, 4)

    # Deterministic parameter init (kaiming_normal_-style gaussians).
    adj = jax.random.normal(k_adj, (n_layers, n_nodes, n_nodes), jnp.float32) * \
        jnp.sqrt(2.0 / (n_nodes * n_nodes))
    bias = jax.random.normal(k_bias, (n_layers, n_nodes), jnp.float32) * \
        jnp.sqrt(2.0 / n_nodes)
    # trainable_features=True -> randn(1, n_nodes - len(idx_input))
    embeddings = jax.random.normal(
        k_emb, (1, n_nodes - len(idx_input)), jnp.float32)

    x = jax.random.normal(k_x, (batch, len(idx_input)), jnp.float32)

    out = gnm_forward(x, embeddings, adj, bias, idx_output)
    out = jax.block_until_ready(out)

    ref = gnm_reference(x, embeddings, adj, bias, idx_output)
    assert out.shape == ref.shape, (out.shape, ref.shape)
    assert jnp.allclose(out, ref, atol=1e-5, rtol=1e-5), "mismatch vs reference"

    print("KERNEL_OK")
</pallas_src>

<mosaic_0001>
module attributes {stable_mosaic.version = 11 : i64} {
  func.func @gnm_kernel(%arg0: memref<8x128xf32, #tpu.memory_space<vmem>>, %arg1: memref<2x128x128xf32, #tpu.memory_space<vmem>>, %arg2: memref<2x128xf32, #tpu.memory_space<vmem>>, %arg3: memref<128x128xf32, #tpu.memory_space<vmem>>, %arg4: memref<1x128xf32, #tpu.memory_space<vmem>>, %arg5: memref<8x128xf32, #tpu.memory_space<vmem>>) attributes {dimension_semantics = [], scalar_prefetch = 0 : i64, scratch_operands = 0 : i64, tpu.core_type = #tpu.core_type<tc>} {
    %c0 = arith.constant 0 : index
    %c0_0 = arith.constant 0 : index
    %0 = vector.load %arg0[%c0, %c0_0] : memref<8x128xf32, #tpu.memory_space<vmem>>, vector<8x128xf32>
    %c0_1 = arith.constant 0 : index
    %c0_2 = arith.constant 0 : index
    %c0_3 = arith.constant 0 : index
    %1 = vector.load %arg1[%c0_1, %c0_2, %c0_3] : memref<2x128x128xf32, #tpu.memory_space<vmem>>, vector<1x128x128xf32>
    %2 = vector.shape_cast %1 : vector<1x128x128xf32> to vector<128x128xf32>
    %c0_4 = arith.constant 0 : index
    %c0_5 = arith.constant 0 : index
    %3 = vector.load %arg2[%c0_4, %c0_5] : memref<2x128xf32, #tpu.memory_space<vmem>>, vector<1x128xf32>
    %cst = arith.constant dense<0.000000e+00> : vector<8x128xf32>
    %4 = tpu.matmul %0, %2, %cst {dimension_numbers = #tpu.dot_dimension_numbers<[1], [0], [0], [1], [0, 0, 1, 1], [], []>} : vector<8x128xf32>, vector<128x128xf32>, vector<8x128xf32> -> vector<8x128xf32>
    %5 = vector.broadcast %3 : vector<1x128xf32> to vector<8x128xf32>
    %6 = arith.addf %4, %5 : vector<8x128xf32>
    %cst_6 = arith.constant 0.000000e+00 : f32
    %7 = vector.broadcast %cst_6 : f32 to vector<8x128xf32>
    %8 = arith.maximumf %6, %7 : vector<8x128xf32>
    %c1 = arith.constant 1 : index
    %c0_7 = arith.constant 0 : index
    %c0_8 = arith.constant 0 : index
    %9 = vector.load %arg1[%c1, %c0_7, %c0_8] : memref<2x128x128xf32, #tpu.memory_space<vmem>>, vector<1x128x128xf32>
    %10 = vector.shape_cast %9 : vector<1x128x128xf32> to vector<128x128xf32>
    %c1_9 = arith.constant 1 : index
    %c0_10 = arith.constant 0 : index
    %11 = vector.load %arg2[%c1_9, %c0_10] : memref<2x128xf32, #tpu.memory_space<vmem>>, vector<1x128xf32>
    %cst_11 = arith.constant dense<0.000000e+00> : vector<8x128xf32>
    %12 = tpu.matmul %8, %10, %cst_11 {dimension_numbers = #tpu.dot_dimension_numbers<[1], [0], [0], [1], [0, 0, 1, 1], [], []>} : vector<8x128xf32>, vector<128x128xf32>, vector<8x128xf32> -> vector<8x128xf32>
    %13 = vector.broadcast %11 : vector<1x128xf32> to vector<8x128xf32>
    %14 = arith.addf %12, %13 : vector<8x128xf32>
    %cst_12 = arith.constant 0.000000e+00 : f32
    %15 = vector.broadcast %cst_12 : f32 to vector<8x128xf32>
    %16 = arith.maximumf %14, %15 : vector<8x128xf32>
    %c0_13 = arith.constant 0 : index
    %c0_14 = arith.constant 0 : index
    %17 = vector.load %arg3[%c0_13, %c0_14] : memref<128x128xf32, #tpu.memory_space<vmem>>, vector<128x128xf32>
    %cst_15 = arith.constant dense<0.000000e+00> : vector<8x128xf32>
    %18 = tpu.matmul %16, %17, %cst_15 {dimension_numbers = #tpu.dot_dimension_numbers<[1], [0], [0], [1], [0, 0, 1, 1], [], []>} : vector<8x128xf32>, vector<128x128xf32>, vector<8x128xf32> -> vector<8x128xf32>
    %c0_16 = arith.constant 0 : index
    %c0_17 = arith.constant 0 : index
    %19 = vector.load %arg4[%c0_16, %c0_17] : memref<1x128xf32, #tpu.memory_space<vmem>>, vector<1x128xf32>
    %20 = vector.broadcast %19 : vector<1x128xf32> to vector<8x128xf32>
    %21 = arith.addf %18, %20 : vector<8x128xf32>
    %c0_18 = arith.constant 0 : index
    %c0_19 = arith.constant 0 : index
    %22 = vector.load %arg5[%c0_18, %c0_19] : memref<8x128xf32, #tpu.memory_space<vmem>>, vector<8x128xf32>
    tpu.vector_store %arg5[%c0_18, %c0_19], %21 {strides = array<i32>} : memref<8x128xf32, #tpu.memory_space<vmem>>, vector<8x128xf32>,
    return
  }
}

</mosaic_0001>

<llo_original>
// kernel: gnm_forward.1
$region0: #{gnm_forward.1}
  #allocation0 [shape = 'u32[]', space=smem, size = 0x4, offset = 0x4, fixed_abs, tag = 'smem constant byte address 0x4 - core index']
  #allocation1 [shape = 'u32[72,128]{1,0:T(1,128)}', space=vmem, size = 0x9000, scoped, tag = 'internal scratch']
  %s0 = inlined_call_operand.vmem [shape: f32[8,128], index: 0, kind: input, shape index: {}]
  %s1 = inlined_call_operand.vmem [shape: f32[2,128,128], index: 1, kind: input, shape index: {}]
  %s2 = inlined_call_operand.vmem [shape: f32[2,128], index: 2, kind: input, shape index: {}]
  %s3 = inlined_call_operand.vmem [shape: f32[128,128], index: 3, kind: input, shape index: {}]
  %s4 = inlined_call_operand.vmem [shape: f32[1,128], index: 4, kind: input, shape index: {}]
  %s5 = inlined_call_operand.vmem [shape: f32[8,128], index: 5, kind: output, shape index: {}]
  %s6 = sld [smem:[#allocation0]]
  $region30: #{gnm_forward.1} parent=0
    _
  %s8 = ssub.s32 1, %s6
  %s9 = scalar_select 0, %s8, %s6
  // Predicated region
  $region2: #{gnm_forward.1} parent=0 // pred_check
    _
  $region3: #{gnm_forward.1} parent=0 // pred_check_branch
    %11 = sbr.rel (0) target = $region5
  $region4: #{gnm_forward.1} parent=0 // pred_region
    _
  $region5: #{gnm_forward.1} parent=0 // pred_fallthru
    _
  // Predicated region
  $region6: #{gnm_forward.1} parent=0 // pred_check
    _
  $region7: #{gnm_forward.1} parent=0 // pred_check_branch
    %13 = sbr.rel (0) target = $region9
  $region8: #{gnm_forward.1} parent=0 // pred_region
    _
  $region9: #{gnm_forward.1} parent=0 // pred_fallthru
    _
  // Predicated region
  $region10: #{gnm_forward.1} parent=0 // pred_check
    _
  $region11: #{gnm_forward.1} parent=0 // pred_check_branch
    %15 = sbr.rel (0) target = $region13
  $region12: #{gnm_forward.1} parent=0 // pred_region
    _
  $region13: #{gnm_forward.1} parent=0 // pred_fallthru
    _
  // Predicated region
  $region14: #{gnm_forward.1} parent=0 // pred_check
    _
  $region15: #{gnm_forward.1} parent=0 // pred_check_branch
    %17 = sbr.rel (0) target = $region17
  $region16: #{gnm_forward.1} parent=0 // pred_region
    _
  $region17: #{gnm_forward.1} parent=0 // pred_fallthru
    _
  // Predicated region
  $region18: #{gnm_forward.1} parent=0 // pred_check
    _
  $region19: #{gnm_forward.1} parent=0 // pred_check_branch
    %19 = sbr.rel (0) target = $region21
  $region20: #{gnm_forward.1} parent=0 // pred_region
    _
  $region21: #{gnm_forward.1} parent=0 // pred_fallthru
    _
  %v20 = vld [vmem:[%s0] sm:$0xff]
  %v21 = vld [vmem:[%s1] sm:$0xff]
  %v22 = vld [vmem:[%s1 + $0x8] sm:$0xff]
  %v23 = vld [vmem:[%s1 + $0x10] sm:$0xff]
  %v24 = vld [vmem:[%s1 + $0x18] sm:$0xff]
  %v25 = vld [vmem:[%s1 + $0x20] sm:$0xff]
  %v26 = vld [vmem:[%s1 + $0x28] sm:$0xff]
  %v27 = vld [vmem:[%s1 + $0x30] sm:$0xff]
  %v28 = vld [vmem:[%s1 + $0x38] sm:$0xff]
  %v29 = vld [vmem:[%s1 + $0x40] sm:$0xff]
  %v30 = vld [vmem:[%s1 + $0x48] sm:$0xff]
  %v31 = vld [vmem:[%s1 + $0x50] sm:$0xff]
  %v32 = vld [vmem:[%s1 + $0x58] sm:$0xff]
  %v33 = vld [vmem:[%s1 + $0x60] sm:$0xff]
  %v34 = vld [vmem:[%s1 + $0x68] sm:$0xff]
  %v35 = vld [vmem:[%s1 + $0x70] sm:$0xff]
  %v36 = vld [vmem:[%s1 + $0x78] sm:$0xff]
  %v37 = vld [vmem:[%s2] sm:$0x1]
  %v38 = vperm.slane %v37, 0
  %39 = vmatpush.msra.mxu0 %v36
  %40 = vmatpush.msra.mxu0 %v35
  %41 = vmatpush.msra.mxu0 %v34
  %42 = vmatpush.msra.mxu0 %v33
  %43 = vmatpush.msra.mxu0 %v32
  %44 = vmatpush.msra.mxu0 %v31
  %45 = vmatpush.msra.mxu0 %v30
  %46 = vmatpush.msra.mxu0 %v29
  %47 = vmatpush.msra.mxu0 %v28
  %48 = vmatpush.msra.mxu0 %v27
  %49 = vmatpush.msra.mxu0 %v26
  %50 = vmatpush.msra.mxu0 %v25
  %51 = vmatpush.msra.mxu0 %v24
  %52 = vmatpush.msra.mxu0 %v23
  %53 = vmatpush.msra.mxu0 %v22
  %54 = vmatpush.msra.mxu0 %v21
  %55 = vmatmul.f32.gmra.mxu0 %v20
  %v56 = vpop.f32.mrf.mxu0
  %v57 = vadd.f32 %v38, %v56
  %58 = vdwg.mxu0
  %v59 = vmax.f32 %v57, 0.0
  %s60 = scalar_lea.vmem %s1, 128
  %v61 = vld [vmem:[%s60] sm:$0xff]
  %v62 = vld [vmem:[%s60 + $0x8] sm:$0xff]
  %v63 = vld [vmem:[%s60 + $0x10] sm:$0xff]
  %v64 = vld [vmem:[%s60 + $0x18] sm:$0xff]
  %v65 = vld [vmem:[%s60 + $0x20] sm:$0xff]
  %v66 = vld [vmem:[%s60 + $0x28] sm:$0xff]
  %v67 = vld [vmem:[%s60 + $0x30] sm:$0xff]
  %v68 = vld [vmem:[%s60 + $0x38] sm:$0xff]
  %v69 = vld [vmem:[%s60 + $0x40] sm:$0xff]
  %v70 = vld [vmem:[%s60 + $0x48] sm:$0xff]
  %v71 = vld [vmem:[%s60 + $0x50] sm:$0xff]
  %v72 = vld [vmem:[%s60 + $0x58] sm:$0xff]
  %v73 = vld [vmem:[%s60 + $0x60] sm:$0xff]
  %v74 = vld [vmem:[%s60 + $0x68] sm:$0xff]
  %v75 = vld [vmem:[%s60 + $0x70] sm:$0xff]
  %v76 = vld [vmem:[%s60 + $0x78] sm:$0xff]
  %v77 = vld [vmem:[%s2 + $0x1] sm:$0x1]
  %v78 = vperm.slane %v77, 0
  %79 = vmatpush.msra.mxu0 %v76
  %80 = vmatpush.msra.mxu0 %v75
  %81 = vmatpush.msra.mxu0 %v74
  %82 = vmatpush.msra.mxu0 %v73
  %83 = vmatpush.msra.mxu0 %v72
  %84 = vmatpush.msra.mxu0 %v71
  %85 = vmatpush.msra.mxu0 %v70
  %86 = vmatpush.msra.mxu0 %v69
  %87 = vmatpush.msra.mxu0 %v68
  %88 = vmatpush.msra.mxu0 %v67
  %89 = vmatpush.msra.mxu0 %v66
  %90 = vmatpush.msra.mxu0 %v65
  %91 = vmatpush.msra.mxu0 %v64
  %92 = vmatpush.msra.mxu0 %v63
  %93 = vmatpush.msra.mxu0 %v62
  %94 = vmatpush.msra.mxu0 %v61
  %95 = vmatmul.f32.gmra.mxu0 %v59
  %v96 = vpop.f32.mrf.mxu0
  %v97 = vadd.f32 %v78, %v96
  %98 = vdwg.mxu0
  %v99 = vmax.f32 %v97, 0.0
  %v100 = vld [vmem:[%s3] sm:$0xff]
  %v101 = vld [vmem:[%s3 + $0x8] sm:$0xff]
  %v102 = vld [vmem:[%s3 + $0x10] sm:$0xff]
  %v103 = vld [vmem:[%s3 + $0x18] sm:$0xff]
  %v104 = vld [vmem:[%s3 + $0x20] sm:$0xff]
  %v105 = vld [vmem:[%s3 + $0x28] sm:$0xff]
  %v106 = vld [vmem:[%s3 + $0x30] sm:$0xff]
  %v107 = vld [vmem:[%s3 + $0x38] sm:$0xff]
  %v108 = vld [vmem:[%s3 + $0x40] sm:$0xff]
  %v109 = vld [vmem:[%s3 + $0x48] sm:$0xff]
  %v110 = vld [vmem:[%s3 + $0x50] sm:$0xff]
  %v111 = vld [vmem:[%s3 + $0x58] sm:$0xff]
  %v112 = vld [vmem:[%s3 + $0x60] sm:$0xff]
  %v113 = vld [vmem:[%s3 + $0x68] sm:$0xff]
  %v114 = vld [vmem:[%s3 + $0x70] sm:$0xff]
  %v115 = vld [vmem:[%s3 + $0x78] sm:$0xff]
  %v116 = vld [vmem:[%s4] sm:$0x1]
  %v118 = vperm.slane %v116, 0
  %120 = vmatpush.msra.mxu0 %v115
  %121 = vmatpush.msra.mxu0 %v114
  %122 = vmatpush.msra.mxu0 %v113
  %123 = vmatpush.msra.mxu0 %v112
  %124 = vmatpush.msra.mxu0 %v111
  %125 = vmatpush.msra.mxu0 %v110
  %126 = vmatpush.msra.mxu0 %v109
  %127 = vmatpush.msra.mxu0 %v108
  %128 = vmatpush.msra.mxu0 %v107
  %129 = vmatpush.msra.mxu0 %v106
  %130 = vmatpush.msra.mxu0 %v105
  %131 = vmatpush.msra.mxu0 %v104
  %132 = vmatpush.msra.mxu0 %v103
  %133 = vmatpush.msra.mxu0 %v102
  %134 = vmatpush.msra.mxu0 %v101
  %135 = vmatpush.msra.mxu0 %v100
  %136 = vmatmul.f32.gmra.mxu0 %v99
  %v137 = vpop.f32.mrf.mxu0
  %v138 = vadd.f32 %v118, %v137
  %139 = vdwg.mxu0
  %140 = vst [vmem:[%s5] sm:$0xff] %v138
  // Predicated region
  $region22: #{gnm_forward.1} parent=0 // pred_check
    _
  $region23: #{gnm_forward.1} parent=0 // pred_check_branch
    %142 = sbr.rel (0) target = $region25
  $region24: #{gnm_forward.1} parent=0 // pred_region
    _
  $region25: #{gnm_forward.1} parent=0 // pred_fallthru
    _
  // Predicated region
  $region26: #{gnm_forward.1} parent=0 // pred_check
    _
  $region27: #{gnm_forward.1} parent=0 // pred_check_branch
    %144 = sbr.rel (0) target = $region29
  $region28: #{gnm_forward.1} parent=0 // pred_region
    _
  $region29: #{gnm_forward.1} parent=0 // pred_fallthru
    _

</llo_original>
